<compile_context>
chip_gen: v7x
topology: tpu7x:2x2x1
jax: 0.10.0
libtpu: 0.0.40
codegen_flags: <defaults>
</compile_context>

<pallas_src>
import jax
import jax.numpy as jnp
from jax.experimental import pallas as pl
from jax.experimental.pallas import tpu as pltpu


def fused_affine_kernel(x_ref, scale_ref, shift_ref, o_ref):
    """Single FMA pass over one (row_tile, lane) tile of x.

    scale_ref / shift_ref are (row_tile, 1) effective per-row parameters (the
    whole layer chain folded outside the kernel); they lane-broadcast against
    the tile.  One HBM read and one HBM write of x for the entire chain.
    """
    o_ref[...] = x_ref[...] * scale_ref[...] + shift_ref[...]


def _round_up(v, m):
    return ((v + m - 1) // m) * m


def _choose_row_tile(rows_total, lane, itemsize, x_tile_budget_bytes=2 << 20):
    """Byte-budgeted row tile (multiple of 8), targeting ~2 MiB per x tile.

    With (x_in + x_out) double buffered that is ~8 MiB of VMEM for the x
    stream plus <1 MiB for the (row_tile, 1) params — inside the default
    scoped VMEM limits on v5e/v6e/v7x, so no vmem_limit_bytes override needed.
    """
    rows = x_tile_budget_bytes // max(lane * itemsize, 1)
    rows = max(8, (rows // 8) * 8)
    if rows >= rows_total:
        # Whole array fits in one tile; still split into >=2 multiple-of-8
        # tiles when possible so both v7x TensorCores get work.
        if rows_total >= 16:
            rows = _round_up(pl.cdiv(rows_total, 2), 8)
        else:
            rows = rows_total
    return min(rows, rows_total)


def fused_affine(x2, scale_rows, shift_rows):
    """One pallas_call applying the folded affine map to the whole tensor.

    x2:         (R, lane) flattened, lane-dense input.
    scale_rows: (R, 1) effective per-row multiplicative factor (chain folded).
    shift_rows: (R, 1) effective per-row additive shift (chain folded).
    """
    R, lane = x2.shape
    row_tile = _choose_row_tile(R, lane, x2.dtype.itemsize)
    grid = (pl.cdiv(R, row_tile),)

    return pl.pallas_call(
        fused_affine_kernel,
        grid=grid,
        in_specs=[
            pl.BlockSpec((row_tile, lane), lambda i: (i, 0)),
            pl.BlockSpec((row_tile, 1), lambda i: (i, 0)),
            pl.BlockSpec((row_tile, 1), lambda i: (i, 0)),
        ],
        out_specs=pl.BlockSpec((row_tile, lane), lambda i: (i, 0)),
        out_shape=jax.ShapeDtypeStruct((R, lane), x2.dtype),
        input_output_aliases={0: 0},      # x_out aliases x_in (pure streaming)
        compiler_params=pltpu.CompilerParams(
            dimension_semantics=("parallel",)),
    )(x2, scale_rows, shift_rows)


class SequentialFlowTestPallas:
    """Mirrors SequentialFlowTest.forward: threads (x, y, score, diff_score)
    through the chain (optionally a subset via `inds`).

    All selected affine layers are folded into one effective per-channel
    (scale, shift) pair applied by a single Pallas kernel; the per-layer
    log-det contribution to `score` is a data-independent scalar accumulated
    in plain JAX.  y and diff_score pass through unchanged by these synthetic
    layers, exactly as the container threads whatever each layer returns.
    """

    def __init__(self, layer_params):
        # layer_params: list of (log_scale (C,), shift (C,)) per affine layer.
        self.log_scales = [jnp.asarray(ls, jnp.float32) for ls, _ in layer_params]
        self.shifts = [jnp.asarray(sh, jnp.float32) for _, sh in layer_params]
        self._fold_cache = {}   # inds tuple -> (scale_c, shift_c, sum_log_scale)

    def _fold(self, inds_key):
        """Fold the selected chain (in f32) into one per-channel affine map."""
        if inds_key not in self._fold_cache:
            C = self.log_scales[inds_key[0]].shape[0]
            s = jnp.ones((C,), jnp.float32)
            b = jnp.zeros((C,), jnp.float32)
            ld = jnp.zeros((), jnp.float32)
            for i in inds_key:
                e = jnp.exp(self.log_scales[i])
                s = s * e                       # scale composes multiplicatively
                b = b * e + self.shifts[i]      # shift threaded through later scales
                ld = ld + jnp.sum(self.log_scales[i])
            self._fold_cache[inds_key] = (s, b, ld)
        return self._fold_cache[inds_key]

    def __call__(self, x, y, score, diff_score, inds=None):
        if inds is None:
            inds = range(len(self.log_scales))
        inds_key = tuple(int(i) for i in inds)
        if not inds_key:
            return x, y, score, diff_score

        N, C, H, W = x.shape
        HW = H * W
        scale_c, shift_c, sum_log_scale = self._fold(inds_key)

        # Lane-dense flattening: prefer (N*C, H*W); if H*W is not a multiple of
        # 128 but W is, flatten as (N*C*H, W) so stores stay unmasked vst.
        if HW % 128 == 0 or W % 128 != 0:
            rows, lane, rep = N * C, HW, 1
        else:
            rows, lane, rep = N * C * H, W, H
        # TODO(synk): if neither H*W nor W is a multiple of 128, tail-lane
        # stores are masked (correct, slightly slower) — pad in the wrapper if
        # this ever becomes the production shape.

        scale_rows = jnp.repeat(jnp.tile(scale_c, N), rep)[:, None].astype(x.dtype)
        shift_rows = jnp.repeat(jnp.tile(shift_c, N), rep)[:, None].astype(x.dtype)

        x2 = x.reshape(rows, lane)
        x2 = fused_affine(x2, scale_rows, shift_rows)

        score = score + (HW * sum_log_scale).astype(score.dtype)
        return x2.reshape(N, C, H, W), y, score, diff_score


if __name__ == "__main__":
    key = jax.random.PRNGKey(0)
    N, C, H, W = 2, 4, 16, 16
    n_layers = 3

    kx, ky, ks, kd, kp = jax.random.split(key, 5)
    x = jax.random.normal(kx, (N, C, H, W), jnp.float32)
    y = jax.random.normal(ky, (N, C, H, W), jnp.float32)
    score = jax.random.normal(ks, (N, 1), jnp.float32)
    diff_score = jax.random.normal(kd, (N, 1), jnp.float32)

    # Deterministic per-layer parameters (per-channel log-scale and shift).
    layer_params = []
    for i in range(n_layers):
        ki = jax.random.fold_in(kp, i)
        k1, k2 = jax.random.split(ki)
        log_scale = 0.1 * jax.random.normal(k1, (C,), jnp.float32)
        shift = 0.1 * jax.random.normal(k2, (C,), jnp.float32)
        layer_params.append((log_scale, shift))

    model = SequentialFlowTestPallas(layer_params)
    xo, yo, so, do = model(x, y, score, diff_score)
    jax.block_until_ready((xo, yo, so, do))

    # Pure-JAX reference of the same (sequentially applied) chain.
    xr, sr = x, score
    for log_scale, shift in layer_params:
        xr = xr * jnp.exp(log_scale)[None, :, None, None] + shift[None, :, None, None]
        sr = sr + H * W * jnp.sum(log_scale)

    assert jnp.allclose(xo, xr, atol=1e-5, rtol=1e-5)
    assert jnp.allclose(so, sr, atol=1e-5, rtol=1e-5)
    assert jnp.allclose(yo, y) and jnp.allclose(do, diff_score)

    # Also exercise the `inds` (subset) path of the container.
    xo2, yo2, so2, do2 = model(x, y, score, diff_score, inds=[1])
    jax.block_until_ready((xo2, yo2, so2, do2))
    ls1, sh1 = layer_params[1]
    xr2 = x * jnp.exp(ls1)[None, :, None, None] + sh1[None, :, None, None]
    sr2 = score + H * W * jnp.sum(ls1)
    assert jnp.allclose(xo2, xr2, atol=1e-5, rtol=1e-5)
    assert jnp.allclose(so2, sr2, atol=1e-5, rtol=1e-5)

    print("KERNEL_OK")
</pallas_src>

<mosaic_0001>
module attributes {stable_mosaic.version = 11 : i64} {
  func.func @fused_affine_kernel(%arg0: i32, %arg1: memref<8x256xf32, #tpu.memory_space<vmem>>, %arg2: memref<8x1xf32, #tpu.memory_space<vmem>>, %arg3: memref<8x1xf32, #tpu.memory_space<vmem>>, %arg4: memref<8x256xf32, #tpu.memory_space<vmem>>) attributes {dimension_semantics = [#tpu.dimension_semantics<parallel>], iteration_bounds = array<i64: 1>, scalar_prefetch = 0 : i64, scratch_operands = 0 : i64, tpu.core_type = #tpu.core_type<tc>, window_params = [{transform_indices = @transform_0, window_bounds = array<i64: 8, 256>}, {transform_indices = @transform_1, window_bounds = array<i64: 8, 1>}, {transform_indices = @transform_2, window_bounds = array<i64: 8, 1>}, {transform_indices = @transform_3, window_bounds = array<i64: 8, 256>}]} {
    %c0 = arith.constant 0 : index
    %c0_0 = arith.constant 0 : index
    %0 = vector.load %arg1[%c0, %c0_0] : memref<8x256xf32, #tpu.memory_space<vmem>>, vector<8x256xf32>
    %c0_1 = arith.constant 0 : index
    %c0_2 = arith.constant 0 : index
    %1 = vector.load %arg2[%c0_1, %c0_2] : memref<8x1xf32, #tpu.memory_space<vmem>>, vector<8x1xf32>
    %2 = vector.broadcast %1 : vector<8x1xf32> to vector<8x256xf32>
    %3 = arith.mulf %0, %2 : vector<8x256xf32>
    %c0_3 = arith.constant 0 : index
    %c0_4 = arith.constant 0 : index
    %4 = vector.load %arg3[%c0_3, %c0_4] : memref<8x1xf32, #tpu.memory_space<vmem>>, vector<8x1xf32>
    %5 = vector.broadcast %4 : vector<8x1xf32> to vector<8x256xf32>
    %6 = arith.addf %3, %5 : vector<8x256xf32>
    %c0_5 = arith.constant 0 : index
    %c0_6 = arith.constant 0 : index
    %7 = vector.load %arg4[%c0_5, %c0_6] : memref<8x256xf32, #tpu.memory_space<vmem>>, vector<8x256xf32>
    tpu.vector_store %arg4[%c0_5, %c0_6], %6 {strides = array<i32>} : memref<8x256xf32, #tpu.memory_space<vmem>>, vector<8x256xf32>,
    return
  }
  func.func @transform_0(%arg0: i32) -> (i32, i32) {
    %c0_i32 = arith.constant 0 : i32
    %c0_i32_0 = arith.constant 0 : i32
    return %arg0, %c0_i32 : i32, i32
  }
  func.func @transform_1(%arg0: i32) -> (i32, i32) {
    %c0_i32 = arith.constant 0 : i32
    %c0_i32_0 = arith.constant 0 : i32
    return %arg0, %c0_i32 : i32, i32
  }
  func.func @transform_2(%arg0: i32) -> (i32, i32) {
    %c0_i32 = arith.constant 0 : i32
    %c0_i32_0 = arith.constant 0 : i32
    return %arg0, %c0_i32 : i32, i32
  }
  func.func @transform_3(%arg0: i32) -> (i32, i32) {
    %c0_i32 = arith.constant 0 : i32
    %c0_i32_0 = arith.constant 0 : i32
    return %arg0, %c0_i32 : i32, i32
  }
}

</mosaic_0001>

<llo_original>
// kernel: tpu_custom_call.1
$region0: #{tpu_custom_call.1}
  #allocation0 [shape = 'u32[]', space=smem, size = 0x4, offset = 0x4, fixed_abs, tag = 'smem constant byte address 0x4 - core index']
  #allocation1 [shape = 'u32[144,128]{1,0:T(1,128)}', space=vmem, size = 0x12000, scoped, tag = 'internal scratch']
  %s0 = inlined_call_operand.hbm [shape: f32[8,256], index: 0, kind: input, shape index: {}, may-alias: {0,3}]
  %s1 = inlined_call_operand.vmem [shape: f32[8,1], index: 1, kind: input, shape index: {}]
  %s2 = inlined_call_operand.vmem [shape: f32[8,1], index: 2, kind: input, shape index: {}]
  %s3 = inlined_call_operand.hbm [shape: f32[8,256], index: 3, kind: output, shape index: {}, may-alias: {0,3}]
  %s4 = sld [smem:[#allocation0]]
  $region26: #{tpu_custom_call.1} parent=0
    _
  %s6 = ssub.s32 1, %s4
  %s7 = scalar_select 0, %s6, %s4
  $region1: #{tpu_custom_call.1} parent=0
    #allocation2 [shape = 'u8[8192]{0}', space=vmem, size = 0x2000, scoped, tag = 'input window, operand 0, single buffered']
    #allocation3 [shape = 's32[1]{0}', space=sflag, size = 0x4, scoped, tag = 'scoped memory for tpu_custom_call.1']
    #allocation4 [shape = 's32[1]{0}', space=sflag, size = 0x4, scoped, tag = 'scoped memory for tpu_custom_call.1']
    #allocation5 [shape = 'u8[8192]{0}', space=vmem, size = 0x2000, scoped, tag = 'output window, operand 0, single buffered']
    %8 = vsyncpa [#allocation3], 0
    %9 = vsyncpa [#allocation4], 0
    // Predicated region
    $region2: #{tpu_custom_call.1} parent=1 // pred_check
      _
    $region3: #{tpu_custom_call.1} parent=1 // pred_check_branch
      %11 = sbr.rel (0) target = $region5
    $region4: #{tpu_custom_call.1} parent=1 // pred_region
      %s13 = ssub.s32 256, 256
      %14 = vsyncadd [#allocation3], %s13
      %s16 = sshll.u32 [#allocation2], 4
      %s17 = int_to_ptr.vmem [resolvable:$true] %s16
      %19 = dma.hbm_to_vmem [thread:$0]  %s0, 256, %s17, [#allocation3]
    $region5: #{tpu_custom_call.1} parent=1 // pred_fallthru
      _
    // Predicated region
    $region6: #{tpu_custom_call.1} parent=1 // pred_check
      _
    $region7: #{tpu_custom_call.1} parent=1 // pred_check_branch
      %21 = sbr.rel (0) target = $region9
    $region8: #{tpu_custom_call.1} parent=1 // pred_region
      _
    $region9: #{tpu_custom_call.1} parent=1 // pred_fallthru
      _
    // Predicated region
    $region10: #{tpu_custom_call.1} parent=1 // pred_check
      _
    $region11: #{tpu_custom_call.1} parent=1 // pred_check_branch
      %23 = sbr.rel (0) target = $region13
    $region12: #{tpu_custom_call.1} parent=1 // pred_region
      _
    $region13: #{tpu_custom_call.1} parent=1 // pred_fallthru
      _
    // Predicated region
    $region14: #{tpu_custom_call.1} parent=1 // pred_check
      _
    $region15: #{tpu_custom_call.1} parent=1 // pred_check_branch
      %25 = sbr.rel (0) target = $region17
    $region16: #{tpu_custom_call.1} parent=1 // pred_region
      %26 = dma.done [#allocation3], 256
    $region17: #{tpu_custom_call.1} parent=1 // pred_fallthru
      _
    %v27 = vld [vmem:[#allocation2] sm:$0xff]
    %v28 = vld [vmem:[#allocation2 + $0x8] sm:$0xff]
    %v29 = vld [vmem:[%s1] sm:$0xff]
    %31 = vset.pattern.permute.xlu0 0
    %32 = vperm.xlu0 %31, %v29
    %v33 = vpop.permute.xlu0 %32
    %v35 = vmul.f32 %v27, %v33
    %v36 = vmul.f32 %v28, %v33
    %v37 = vld [vmem:[%s2] sm:$0xff]
    %39 = vset.pattern.permute.xlu0 0
    %40 = vperm.xlu0 %39, %v37
    %v41 = vpop.permute.xlu0 %40
    %v43 = vadd.f32 %v35, %v41
    %v44 = vadd.f32 %v36, %v41
    %45 = vst [vmem:[#allocation5] sm:$0xff] %v43
    %46 = vst [vmem:[#allocation5 + $0x8] sm:$0xff] %v44
    // Predicated region
    $region18: #{tpu_custom_call.1} parent=1 // pred_check
      _
    $region19: #{tpu_custom_call.1} parent=1 // pred_check_branch
      %48 = sbr.rel (0) target = $region21
    $region20: #{tpu_custom_call.1} parent=1 // pred_region
      %s50 = ssub.s32 256, 256
      %51 = vsyncadd [#allocation4], %s50
      %s53 = sshll.u32 [#allocation5], 4
      %s54 = int_to_ptr.vmem [resolvable:$true] %s53
      %56 = dma.vmem_to_hbm [thread:$0]  %s54, 256, %s3, [#allocation4]
    $region21: #{tpu_custom_call.1} parent=1 // pred_fallthru
      _
    // Predicated region
    $region22: #{tpu_custom_call.1} parent=1 // pred_check
      _
    $region23: #{tpu_custom_call.1} parent=1 // pred_check_branch
      %58 = sbr.rel (0) target = $region25
    $region24: #{tpu_custom_call.1} parent=1 // pred_region
      %59 = dma.done [#allocation4], 256
    $region25: #{tpu_custom_call.1} parent=1 // pred_fallthru
      _
    %60 = vsyncpa [#allocation3], 1
    %61 = vsyncpa [#allocation4], 1

</llo_original>
